<compile_context>
chip_gen: v7x
topology: tpu7x:2x2x1
jax: 0.10.0
libtpu: 0.0.40
codegen_flags: <defaults>
</compile_context>

<pallas_src>
import jax
import jax.numpy as jnp
from jax import lax
from jax.experimental import pallas as pl
from jax.experimental.pallas import tpu as pltpu


def _round_up(v, m):
    return ((v + m - 1) // m) * m


def _discriminator_kernel(x_ref, a_ref, w1x_ref, w1a_ref, b1_ref, w2_ref,
                          b2_ref, o_ref):
    # Fused concat: cat([x, a]) @ W1  ==  x @ W1[:S] + a @ W1[S:]
    h = jnp.dot(x_ref[...], w1x_ref[...], preferred_element_type=jnp.float32)
    h = h + jnp.dot(a_ref[...], w1a_ref[...], preferred_element_type=jnp.float32)
    h = jnp.maximum(h + b1_ref[...], 0.0)                      # (TB, H), VPU

    # Second layer as (1, H) . (TB, H)^T -> (1, TB): lane-dense logits row.
    # TODO(synk): producing h directly as (H, TB) would avoid the implicit
    # transpose here, but with x/a arriving as (TB, features) that would just
    # move the transpose onto the (much larger) input operands.
    logit = lax.dot_general(
        w2_ref[...], h,
        dimension_numbers=(((1,), (1,)), ((), ())),
        preferred_element_type=jnp.float32,
    )
    logit = logit + b2_ref[0]                                   # scalar bias from SMEM

    # Exact sigmoid: exp goes to the EUP; the divide is hidden under HBM slack.
    o_ref[...] = (1.0 / (1.0 + jnp.exp(-logit))).astype(o_ref.dtype)


def _choose_batch_tile(B, tb_max=8192):
    """Batch tile: big (amortize per-step overhead), >=2 grid steps when it
    matters (dual-TC on v7x), multiple of 128 (unmasked lane-dense stores)."""
    if B <= 256:
        return B                              # single full-extent block
    half = -(-B // 2)                         # ceil(B / 2)
    return min(tb_max, _round_up(half, 128))


def discriminator_forward(x, a, w1, b1, w2, b2, *, use_bf16_inputs=True,
                          tb_max=8192):
    """Pallas forward.

    x : (B, S)      a : (B, A)
    w1: (S + A, H)  b1: (1, H)
    w2: (1, H)      b2: (1,)
    returns (B, 1) float32.
    """
    B, S = x.shape
    A = a.shape[1]
    H = w1.shape[1]

    # Split W1 once (tiny, constant-folded under jit) so concat never happens.
    w1x = w1[:S]
    w1a = w1[S:]

    if use_bf16_inputs:
        # Default: the kernel is purely HBM-read-bound on x and a; bf16 halves
        # the dominant traffic. MXU still accumulates in f32; error on the
        # sigmoid output is ~1e-3. Pass use_bf16_inputs=False for exact-f32
        # semantics matching the PyTorch module bit-for-bit-ish.
        x = x.astype(jnp.bfloat16)
        a = a.astype(jnp.bfloat16)
        w1x = w1x.astype(jnp.bfloat16)
        w1a = w1a.astype(jnp.bfloat16)

    TB = _choose_batch_tile(B, tb_max)
    nb = pl.cdiv(B, TB)

    in_isz = 2 if use_bf16_inputs else 4

    # VMEM budget: double-buffered lane-padded (->128 lanes) x/a streams, the
    # f32 hidden intermediate plus its transposed copy, output row buffers,
    # weights and slack. Capped at 48 MiB (safe inside v7x's 64 MiB physical,
    # raises v5e above its 16 MiB default scoped limit).
    vmem_est = (2 * TB * 128 * in_isz          # x stream (double-buffered)
                + 2 * TB * 128 * in_isz        # a stream (double-buffered)
                + 2 * TB * 128 * 4             # h + transposed h (f32 temps)
                + 2 * 8 * _round_up(TB, 128) * 4   # (1, TB) output buffers
                + (2 << 20))                   # weights, biases, misc
    vmem_limit = int(min(max(vmem_est + (6 << 20), 32 << 20), 48 << 20))

    cost = pl.CostEstimate(
        flops=2 * B * (S + A) * H + 2 * B * H,
        transcendentals=B,                                   # one exp per row
        bytes_accessed=(B * (S + A) * in_isz                 # x, a
                        + (S + A) * H * in_isz + 2 * H * 4 + 4   # weights/bias
                        + B * 4),                            # output
    )

    out_row = pl.pallas_call(
        _discriminator_kernel,
        out_shape=jax.ShapeDtypeStruct((1, B), jnp.float32),
        grid=(nb,),
        in_specs=[
            pl.BlockSpec((TB, S), lambda i: (i, 0)),            # x tile (pipelined)
            pl.BlockSpec((TB, A), lambda i: (i, 0)),            # a tile (pipelined)
            pl.BlockSpec((S, H), lambda i: (0, 0)),             # W1[:S]  (resident)
            pl.BlockSpec((A, H), lambda i: (0, 0)),             # W1[S:]  (resident)
            pl.BlockSpec((1, H), lambda i: (0, 0)),             # b1      (resident)
            pl.BlockSpec((1, H), lambda i: (0, 0)),             # W2      (resident)
            pl.BlockSpec(memory_space=pltpu.MemorySpace.SMEM),  # b2 scalar in SMEM
        ],
        out_specs=pl.BlockSpec((1, TB), lambda i: (0, i)),      # lane-dense output row
        compiler_params=pltpu.CompilerParams(
            dimension_semantics=("parallel",),                  # shard batch over TCs (v7x)
            vmem_limit_bytes=vmem_limit,
        ),
        cost_estimate=cost,
    )(x, a, w1x, w1a, b1, w2, b2)

    # Layout plumbing back to the module's (B, 1) output (trivial on host/XLA).
    return out_row.reshape(B, 1)


def init_params(key, state_dim, hidden_dim, action_dim):
    """Deterministic synthetic init matching nn.Linear shapes."""
    d_in = state_dim + action_dim
    k1, k2, k3, k4 = jax.random.split(key, 4)
    # PyTorch nn.Linear default: U(-1/sqrt(fan_in), 1/sqrt(fan_in))
    lim1 = 1.0 / jnp.sqrt(jnp.float32(d_in))
    lim2 = 1.0 / jnp.sqrt(jnp.float32(hidden_dim))
    w1 = jax.random.uniform(k1, (d_in, hidden_dim), jnp.float32, -lim1, lim1)  # fc1.weight.T
    b1 = jax.random.uniform(k2, (1, hidden_dim), jnp.float32, -lim1, lim1)     # fc1.bias
    w2 = jax.random.uniform(k3, (1, hidden_dim), jnp.float32, -lim2, lim2)     # fc2.weight
    b2 = jax.random.uniform(k4, (1,), jnp.float32, -lim2, lim2)                # fc2.bias
    return w1, b1, w2, b2


def _reference(x, a, w1, b1, w2, b2):
    xa = jnp.concatenate([x, a], axis=1)
    return jax.nn.sigmoid(jnp.maximum(xa @ w1 + b1, 0.0) @ w2.T + b2)


if __name__ == "__main__":
    state_dim, hidden_dim, action_dim = 16, 32, 8

    key = jax.random.PRNGKey(0)
    kx, ka, kp, kx2, ka2 = jax.random.split(key, 5)
    w1, b1, w2, b2 = init_params(kp, state_dim, hidden_dim, action_dim)

    fwd_bf16 = jax.jit(discriminator_forward)
    fwd_f32 = jax.jit(lambda *args: discriminator_forward(*args, use_bf16_inputs=False))

    # --- Small batch (single block), both precision paths ---
    batch = 2
    x = jax.random.normal(kx, (batch, state_dim), jnp.float32)
    a = jax.random.normal(ka, (batch, action_dim), jnp.float32)
    ref = _reference(x, a, w1, b1, w2, b2)

    out_f32 = jax.block_until_ready(fwd_f32(x, a, w1, b1, w2, b2))
    assert out_f32.shape == (batch, 1)
    assert jnp.allclose(out_f32, ref, atol=2e-3, rtol=2e-3)

    out_bf16 = jax.block_until_ready(fwd_bf16(x, a, w1, b1, w2, b2))
    assert out_bf16.shape == (batch, 1)
    assert jnp.allclose(out_bf16, ref, atol=1e-2, rtol=1e-2)

    # --- Medium batch: exercises the multi-step grid + tail-block masking ---
    batch2 = 384   # -> TB = 256, 2 grid steps, partial last block
    x2 = jax.random.normal(kx2, (batch2, state_dim), jnp.float32)
    a2 = jax.random.normal(ka2, (batch2, action_dim), jnp.float32)
    ref2 = _reference(x2, a2, w1, b1, w2, b2)
    out2 = jax.block_until_ready(fwd_bf16(x2, a2, w1, b1, w2, b2))
    assert out2.shape == (batch2, 1)
    assert jnp.allclose(out2, ref2, atol=1e-2, rtol=1e-2)

    print("KERNEL_OK")
</pallas_src>

<mosaic_0001>
module attributes {stable_mosaic.version = 11 : i64} {
  func.func @_discriminator_kernel(%arg0: i32, %arg1: memref<2x16xf32, #tpu.memory_space<vmem>>, %arg2: memref<2x8xf32, #tpu.memory_space<vmem>>, %arg3: memref<16x32xf32, #tpu.memory_space<vmem>>, %arg4: memref<8x32xf32, #tpu.memory_space<vmem>>, %arg5: memref<1x32xf32, #tpu.memory_space<vmem>>, %arg6: memref<1x32xf32, #tpu.memory_space<vmem>>, %arg7: memref<1xf32, #tpu.memory_space<smem>>, %arg8: memref<1x2xf32, #tpu.memory_space<vmem>>) attributes {dimension_semantics = [#tpu.dimension_semantics<parallel>], iteration_bounds = array<i64: 1>, scalar_prefetch = 0 : i64, scratch_operands = 0 : i64, tpu.core_type = #tpu.core_type<tc>, window_params = [{transform_indices = @transform_0, window_bounds = array<i64: 2, 16>}, {transform_indices = @transform_1, window_bounds = array<i64: 2, 8>}, {pipeline_mode = #tpu.pipeline_mode<synchronous>, transform_indices = @transform_2, window_bounds = array<i64: 16, 32>}, {pipeline_mode = #tpu.pipeline_mode<synchronous>, transform_indices = @transform_3, window_bounds = array<i64: 8, 32>}, {pipeline_mode = #tpu.pipeline_mode<synchronous>, transform_indices = @transform_4, window_bounds = array<i64: 1, 32>}, {pipeline_mode = #tpu.pipeline_mode<synchronous>, transform_indices = @transform_5, window_bounds = array<i64: 1, 32>}, {transform_indices = @transform_6, window_bounds = array<i64: 1>}, {transform_indices = @transform_7, window_bounds = array<i64: 1, 2>}]} {
    %c0 = arith.constant 0 : index
    %c0_0 = arith.constant 0 : index
    %0 = vector.load %arg1[%c0, %c0_0] : memref<2x16xf32, #tpu.memory_space<vmem>>, vector<2x16xf32>
    %c0_1 = arith.constant 0 : index
    %c0_2 = arith.constant 0 : index
    %1 = vector.load %arg3[%c0_1, %c0_2] : memref<16x32xf32, #tpu.memory_space<vmem>>, vector<16x32xf32>
    %cst = arith.constant dense<0.000000e+00> : vector<2x32xf32>
    %2 = tpu.matmul %0, %1, %cst {dimension_numbers = #tpu.dot_dimension_numbers<[1], [0], [0], [1], [0, 0, 1, 1], [], []>} : vector<2x16xf32>, vector<16x32xf32>, vector<2x32xf32> -> vector<2x32xf32>
    %c0_3 = arith.constant 0 : index
    %c0_4 = arith.constant 0 : index
    %3 = vector.load %arg2[%c0_3, %c0_4] : memref<2x8xf32, #tpu.memory_space<vmem>>, vector<2x8xf32>
    %c0_5 = arith.constant 0 : index
    %c0_6 = arith.constant 0 : index
    %4 = vector.load %arg4[%c0_5, %c0_6] : memref<8x32xf32, #tpu.memory_space<vmem>>, vector<8x32xf32>
    %cst_7 = arith.constant dense<0.000000e+00> : vector<2x32xf32>
    %5 = tpu.matmul %3, %4, %cst_7 {dimension_numbers = #tpu.dot_dimension_numbers<[1], [0], [0], [1], [0, 0, 1, 1], [], []>} : vector<2x8xf32>, vector<8x32xf32>, vector<2x32xf32> -> vector<2x32xf32>
    %6 = arith.addf %2, %5 : vector<2x32xf32>
    %c0_8 = arith.constant 0 : index
    %c0_9 = arith.constant 0 : index
    %7 = vector.load %arg5[%c0_8, %c0_9] : memref<1x32xf32, #tpu.memory_space<vmem>>, vector<1x32xf32>
    %8 = vector.broadcast %7 : vector<1x32xf32> to vector<2x32xf32>
    %9 = arith.addf %6, %8 : vector<2x32xf32>
    %cst_10 = arith.constant 0.000000e+00 : f32
    %10 = vector.broadcast %cst_10 : f32 to vector<2x32xf32>
    %11 = arith.maximumf %9, %10 : vector<2x32xf32>
    %c0_11 = arith.constant 0 : index
    %c0_12 = arith.constant 0 : index
    %12 = vector.load %arg6[%c0_11, %c0_12] : memref<1x32xf32, #tpu.memory_space<vmem>>, vector<1x32xf32>
    %cst_13 = arith.constant dense<0.000000e+00> : vector<1x2xf32>
    %13 = tpu.matmul %12, %11, %cst_13 {dimension_numbers = #tpu.dot_dimension_numbers<[1], [1], [0], [0], [0, 0, 1, 0], [], []>} : vector<1x32xf32>, vector<2x32xf32>, vector<1x2xf32> -> vector<1x2xf32>
    %c0_14 = arith.constant 0 : index
    %14 = memref.load %arg7[%c0_14] : memref<1xf32, #tpu.memory_space<smem>>
    %15 = vector.broadcast %14 : f32 to vector<1x2xf32>
    %16 = arith.addf %13, %15 : vector<1x2xf32>
    %cst_15 = arith.constant 0.000000e+00 : f32
    %17 = vector.broadcast %cst_15 : f32 to vector<1x2xf32>
    %18 = arith.subf %17, %16 : vector<1x2xf32>
    %19 = math.exp %18 : vector<1x2xf32>
    %cst_16 = arith.constant 1.000000e+00 : f32
    %20 = vector.broadcast %cst_16 : f32 to vector<1x2xf32>
    %21 = arith.addf %20, %19 : vector<1x2xf32>
    %cst_17 = arith.constant 1.000000e+00 : f32
    %22 = vector.broadcast %cst_17 : f32 to vector<1x2xf32>
    %23 = arith.divf %22, %21 : vector<1x2xf32>
    %c0_18 = arith.constant 0 : index
    %c0_19 = arith.constant 0 : index
    %24 = vector.load %arg8[%c0_18, %c0_19] : memref<1x2xf32, #tpu.memory_space<vmem>>, vector<1x2xf32>
    tpu.vector_store %arg8[%c0_18, %c0_19], %23 {strides = array<i32>} : memref<1x2xf32, #tpu.memory_space<vmem>>, vector<1x2xf32>,
    return
  }
  func.func @transform_0(%arg0: i32) -> (i32, i32) {
    %c0_i32 = arith.constant 0 : i32
    %c0_i32_0 = arith.constant 0 : i32
    return %arg0, %c0_i32 : i32, i32
  }
  func.func @transform_1(%arg0: i32) -> (i32, i32) {
    %c0_i32 = arith.constant 0 : i32
    %c0_i32_0 = arith.constant 0 : i32
    return %arg0, %c0_i32 : i32, i32
  }
  func.func @transform_2(%arg0: i32) -> (i32, i32) {
    %c0_i32 = arith.constant 0 : i32
    %c0_i32_0 = arith.constant 0 : i32
    %c0_i32_1 = arith.constant 0 : i32
    return %c0_i32, %c0_i32_0 : i32, i32
  }
  func.func @transform_3(%arg0: i32) -> (i32, i32) {
    %c0_i32 = arith.constant 0 : i32
    %c0_i32_0 = arith.constant 0 : i32
    %c0_i32_1 = arith.constant 0 : i32
    return %c0_i32, %c0_i32_0 : i32, i32
  }
  func.func @transform_4(%arg0: i32) -> (i32, i32) {
    %c0_i32 = arith.constant 0 : i32
    %c0_i32_0 = arith.constant 0 : i32
    %c0_i32_1 = arith.constant 0 : i32
    return %c0_i32, %c0_i32_0 : i32, i32
  }
  func.func @transform_5(%arg0: i32) -> (i32, i32) {
    %c0_i32 = arith.constant 0 : i32
    %c0_i32_0 = arith.constant 0 : i32
    %c0_i32_1 = arith.constant 0 : i32
    return %c0_i32, %c0_i32_0 : i32, i32
  }
  func.func @transform_6(%arg0: i32) -> i32 {
    %c0_i32 = arith.constant 0 : i32
    %c0_i32_0 = arith.constant 0 : i32
    return %c0_i32 : i32
  }
  func.func @transform_7(%arg0: i32) -> (i32, i32) {
    %c0_i32 = arith.constant 0 : i32
    %c0_i32_0 = arith.constant 0 : i32
    return %c0_i32, %arg0 : i32, i32
  }
}

</mosaic_0001>

<llo_original>
// kernel: _lambda_.1
$region0: #{_lambda_.1}
  #allocation0 [shape = 'u32[]', space=smem, size = 0x4, offset = 0x4, fixed_abs, tag = 'smem constant byte address 0x4 - core index']
  #allocation1 [shape = 'u32[144,128]{1,0:T(1,128)}', space=vmem, size = 0x12000, scoped, tag = 'internal scratch']
  #allocation2 [shape = 'f32[1]{0:T(128)S(6)}', space=smem, size = 0x200, scoped, tag = 'scoped memory for _lambda_.1']
  %s0 = inlined_call_operand.vmem [shape: f32[2,16], index: 0, kind: input, shape index: {}]
  %s1 = inlined_call_operand.vmem [shape: f32[2,8], index: 1, kind: input, shape index: {}]
  %s2 = inlined_call_operand.vmem [shape: f32[16,32], index: 2, kind: input, shape index: {}]
  %s3 = inlined_call_operand.vmem [shape: f32[8,32], index: 3, kind: input, shape index: {}]
  %s4 = inlined_call_operand.vmem [shape: f32[1,32], index: 4, kind: input, shape index: {}]
  %s5 = inlined_call_operand.vmem [shape: f32[1,32], index: 5, kind: input, shape index: {}]
  %s6 = inlined_call_operand.<no memory space> [shape: f32[1], index: 6, kind: input, shape index: {}]
  %s7 = inlined_call_operand.hbm [shape: f32[1,2], index: 7, kind: output, shape index: {}]
  %s8 = sld [smem:[#allocation0]]
  $region38: #{_lambda_.1} parent=0
    _
  %s10 = ssub.s32 1, %s8
  %s11 = scalar_select 0, %s10, %s8
  %12 = sst [smem:[#allocation2]] %s6
  $region1: #{_lambda_.1} parent=0
    #allocation3 [shape = 'u8[512]{0}', space=vmem, size = 0x400, scoped, tag = 'output window, operand 0, single buffered']
    #allocation4 [shape = 's32[1]{0}', space=sflag, size = 0x4, scoped, tag = 'scoped memory for _lambda_.1']
    %13 = vsyncpa [#allocation4], 0
    // Predicated region
    $region2: #{_lambda_.1} parent=1 // pred_check
      _
    $region3: #{_lambda_.1} parent=1 // pred_check_branch
      %15 = sbr.rel (0) target = $region5
    $region4: #{_lambda_.1} parent=1 // pred_region
      _
    $region5: #{_lambda_.1} parent=1 // pred_fallthru
      _
    // Predicated region
    $region6: #{_lambda_.1} parent=1 // pred_check
      _
    $region7: #{_lambda_.1} parent=1 // pred_check_branch
      %17 = sbr.rel (0) target = $region9
    $region8: #{_lambda_.1} parent=1 // pred_region
      _
    $region9: #{_lambda_.1} parent=1 // pred_fallthru
      _
    // Predicated region
    $region10: #{_lambda_.1} parent=1 // pred_check
      _
    $region11: #{_lambda_.1} parent=1 // pred_check_branch
      %19 = sbr.rel (0) target = $region13
    $region12: #{_lambda_.1} parent=1 // pred_region
      _
    $region13: #{_lambda_.1} parent=1 // pred_fallthru
      _
    // Predicated region
    $region14: #{_lambda_.1} parent=1 // pred_check
      _
    $region15: #{_lambda_.1} parent=1 // pred_check_branch
      %21 = sbr.rel (0) target = $region17
    $region16: #{_lambda_.1} parent=1 // pred_region
      _
    $region17: #{_lambda_.1} parent=1 // pred_fallthru
      _
    // Predicated region
    $region18: #{_lambda_.1} parent=1 // pred_check
      _
    $region19: #{_lambda_.1} parent=1 // pred_check_branch
      %23 = sbr.rel (0) target = $region21
    $region20: #{_lambda_.1} parent=1 // pred_region
      _
    $region21: #{_lambda_.1} parent=1 // pred_fallthru
      _
    // Predicated region
    $region22: #{_lambda_.1} parent=1 // pred_check
      _
    $region23: #{_lambda_.1} parent=1 // pred_check_branch
      %25 = sbr.rel (0) target = $region25
    $region24: #{_lambda_.1} parent=1 // pred_region
      _
    $region25: #{_lambda_.1} parent=1 // pred_fallthru
      _
    // Predicated region
    $region26: #{_lambda_.1} parent=1 // pred_check
      _
    $region27: #{_lambda_.1} parent=1 // pred_check_branch
      %27 = sbr.rel (0) target = $region29
    $region28: #{_lambda_.1} parent=1 // pred_region
      _
    $region29: #{_lambda_.1} parent=1 // pred_fallthru
      _
    %v28 = vld [vmem:[%s0] sm:$0x3]
    %v29 = vld [vmem:[%s2] sm:$0xff]
    %v30 = vld [vmem:[%s2 + $0x8] sm:$0xff]
    %v31 = vld [vmem:[%s1] sm:$0x3]
    %v32 = vld [vmem:[%s3] sm:$0xff]
    %vm33 = vcmask 64512
    %v35 = vsel %vm33, %v31, 0
    %37 = vmatprep.subr.mxu0 0.0
    %38 = vmatpush1.msra.mxu0 %v32
    %39 = vmatprep.subr.mxu0 0.0
    %40 = vmatpush1.msra.mxu0 0.0
    %41 = vmatprep.subr.mxu0 0.0
    %42 = vmatpush1.msra.mxu0 0.0
    %43 = vmatprep.subr.mxu0 0.0
    %44 = vmatpush1.msra.mxu0 0.0
    %45 = vmatprep.subr.mxu0 0.0
    %46 = vmatpush1.msra.mxu0 0.0
    %47 = vmatprep.subr.mxu0 0.0
    %48 = vmatpush1.msra.mxu0 0.0
    %49 = vmatprep.subr.mxu0 0.0
    %50 = vmatpush1.msra.mxu0 0.0
    %51 = vmatprep.subr.mxu0 0.0
    %52 = vmatpush1.msra.mxu0 0.0
    %53 = vmatprep.subr.mxu0 0.0
    %54 = vmatpush1.msra.mxu0 0.0
    %55 = vmatprep.subr.mxu0 0.0
    %56 = vmatpush1.msra.mxu0 0.0
    %57 = vmatprep.subr.mxu0 0.0
    %58 = vmatpush1.msra.mxu0 0.0
    %59 = vmatprep.subr.mxu0 0.0
    %60 = vmatpush1.msra.mxu0 0.0
    %61 = vmatprep.subr.mxu0 0.0
    %62 = vmatpush1.msra.mxu0 0.0
    %63 = vmatprep.subr.mxu0 0.0
    %64 = vmatpush1.msra.mxu0 0.0
    %65 = vmatprep.subr.mxu0 0.0
    %66 = vmatpush1.msra.mxu0 0.0
    %67 = vmatprep.subr.mxu0 0.0
    %68 = vmatpush1.msra.mxu0 0.0
    %69 = vmatprep.subr.mxu0 0.0
    %70 = vmatpush1.msra.mxu0 0.0
    %71 = vmatprep.subr.mxu0 0.0
    %72 = vmatpush1.msra.mxu0 0.0
    %73 = vmatprep.subr.mxu0 0.0
    %74 = vmatpush1.msra.mxu0 0.0
    %75 = vmatprep.subr.mxu0 0.0
    %76 = vmatpush1.msra.mxu0 0.0
    %77 = vmatprep.subr.mxu0 0.0
    %78 = vmatpush1.msra.mxu0 0.0
    %79 = vmatprep.subr.mxu0 0.0
    %80 = vmatpush1.msra.mxu0 0.0
    %81 = vmatprep.subr.mxu0 0.0
    %82 = vmatpush1.msra.mxu0 0.0
    %83 = vmatprep.subr.mxu0 0.0
    %84 = vmatpush1.msra.mxu0 0.0
    %85 = vmatprep.subr.mxu0 0.0
    %86 = vmatpush1.msra.mxu0 0.0
    %87 = vmatprep.subr.mxu0 0.0
    %88 = vmatpush1.msra.mxu0 0.0
    %89 = vmatprep.subr.mxu0 0.0
    %90 = vmatpush1.msra.mxu0 0.0
    %91 = vmatprep.subr.mxu0 0.0
    %92 = vmatpush1.msra.mxu0 0.0
    %93 = vmatprep.subr.mxu0 0.0
    %94 = vmatpush1.msra.mxu0 0.0
    %95 = vmatprep.subr.mxu0 0.0
    %96 = vmatpush1.msra.mxu0 0.0
    %97 = vmatprep.subr.mxu0 0.0
    %98 = vmatpush1.msra.mxu0 0.0
    %99 = vmatprep.subr.mxu0 0.0
    %100 = vmatpush1.msra.mxu0 0.0
    %101 = vmatprep.mubr.f32.mxu0 0.0
    %102 = vmatmul.mubr.f32.gmra.mrb[0].mxu0 %v35
    %v103 = vpop.f32.mrb[0].mxu0
    %v104 = vadd.f32 0.0, %v103
    %v105 = vpop.f32.mrb[0].mxu0
    %106 = vdwg.mxu0
    %vm107 = vcmask 130048
    %v109 = vsel %vm107, %v28, 0
    %111 = vmatprep.subr.mxu0 0.0
    %112 = vmatpush1.msra.mxu0 %v29
    %113 = vmatprep.subr.mxu0 0.0
    %114 = vmatpush1.msra.mxu0 %v30
    %115 = vmatprep.subr.mxu0 0.0
    %116 = vmatpush1.msra.mxu0 0.0
    %117 = vmatprep.subr.mxu0 0.0
    %118 = vmatpush1.msra.mxu0 0.0
    %119 = vmatprep.subr.mxu0 0.0
    %120 = vmatpush1.msra.mxu0 0.0
    %121 = vmatprep.subr.mxu0 0.0
    %122 = vmatpush1.msra.mxu0 0.0
    %123 = vmatprep.subr.mxu0 0.0
    %124 = vmatpush1.msra.mxu0 0.0
    %125 = vmatprep.subr.mxu0 0.0
    %126 = vmatpush1.msra.mxu0 0.0
    %127 = vmatprep.subr.mxu0 0.0
    %128 = vmatpush1.msra.mxu0 0.0
    %129 = vmatprep.subr.mxu0 0.0
    %130 = vmatpush1.msra.mxu0 0.0
    %131 = vmatprep.subr.mxu0 0.0
    %132 = vmatpush1.msra.mxu0 0.0
    %133 = vmatprep.subr.mxu0 0.0
    %134 = vmatpush1.msra.mxu0 0.0
    %135 = vmatprep.subr.mxu0 0.0
    %136 = vmatpush1.msra.mxu0 0.0
    %137 = vmatprep.subr.mxu0 0.0
    %138 = vmatpush1.msra.mxu0 0.0
    %139 = vmatprep.subr.mxu0 0.0
    %140 = vmatpush1.msra.mxu0 0.0
    %141 = vmatprep.subr.mxu0 0.0
    %142 = vmatpush1.msra.mxu0 0.0
    %143 = vmatprep.subr.mxu0 0.0
    %144 = vmatpush1.msra.mxu0 0.0
    %145 = vmatprep.subr.mxu0 0.0
    %146 = vmatpush1.msra.mxu0 0.0
    %147 = vmatprep.subr.mxu0 0.0
    %148 = vmatpush1.msra.mxu0 0.0
    %149 = vmatprep.subr.mxu0 0.0
    %150 = vmatpush1.msra.mxu0 0.0
    %151 = vmatprep.subr.mxu0 0.0
    %152 = vmatpush1.msra.mxu0 0.0
    %153 = vmatprep.subr.mxu0 0.0
    %154 = vmatpush1.msra.mxu0 0.0
    %155 = vmatprep.subr.mxu0 0.0
    %156 = vmatpush1.msra.mxu0 0.0
    %157 = vmatprep.subr.mxu0 0.0
    %158 = vmatpush1.msra.mxu0 0.0
    %159 = vmatprep.subr.mxu0 0.0
    %160 = vmatpush1.msra.mxu0 0.0
    %161 = vmatprep.subr.mxu0 0.0
    %162 = vmatpush1.msra.mxu0 0.0
    %163 = vmatprep.subr.mxu0 0.0
    %164 = vmatpush1.msra.mxu0 0.0
    %165 = vmatprep.subr.mxu0 0.0
    %166 = vmatpush1.msra.mxu0 0.0
    %167 = vmatprep.subr.mxu0 0.0
    %168 = vmatpush1.msra.mxu0 0.0
    %169 = vmatprep.subr.mxu0 0.0
    %170 = vmatpush1.msra.mxu0 0.0
    %171 = vmatprep.subr.mxu0 0.0
    %172 = vmatpush1.msra.mxu0 0.0
    %173 = vmatprep.subr.mxu0 0.0
    %174 = vmatpush1.msra.mxu0 0.0
    %175 = vmatprep.mubr.f32.mxu0 0.0
    %176 = vmatmul.mubr.f32.gmra.mrb[0].mxu0 %v109
    %v177 = vpop.f32.mrb[0].mxu0
    %v178 = vadd.f32 %v104, %v177
    %v179 = vpop.f32.mrb[0].mxu0
    %180 = vdwg.mxu0
    %v181 = vld [vmem:[%s4] sm:$0x1]
    %v183 = vlaneseq
    %v184 = vshrl.u32 %v183, 7
    %v185 = vsub.s32 0, %v184
    %v186 = vrot.slane %v181, %v185
    %v188 = vadd.f32 %v178, %v186
    %v189 = vmax.f32 %v188, 0.0
    %v190 = vld [vmem:[%s5] sm:$0x1]
    %s191 = sld [smem:[#allocation2]]
    %v192 = vstv %s191
    %vm193 = vcmask 261120
    %v195 = vsel %vm193, %v190, 0
    %v198 = vsel %vm193, %v189, 0
    %200 = vmatprep.subr.mxu0 0.0
    %201 = vmatpush1.xpose.msra.mxu0 %v198
    %202 = vmatprep.subr.mxu0 0.0
    %203 = vmatpush1.xpose.msra.mxu0 0.0
    %204 = vmatprep.subr.mxu0 0.0
    %205 = vmatpush1.xpose.msra.mxu0 0.0
    %206 = vmatprep.subr.mxu0 0.0
    %207 = vmatpush1.xpose.msra.mxu0 0.0
    %208 = vmatprep.subr.mxu0 0.0
    %209 = vmatpush1.xpose.msra.mxu0 0.0
    %210 = vmatprep.subr.mxu0 0.0
    %211 = vmatpush1.xpose.msra.mxu0 0.0
    %212 = vmatprep.subr.mxu0 0.0
    %213 = vmatpush1.xpose.msra.mxu0 0.0
    %214 = vmatprep.subr.mxu0 0.0
    %215 = vmatpush1.xpose.msra.mxu0 0.0
    %216 = vmatprep.subr.mxu0 0.0
    %217 = vmatpush1.xpose.msra.mxu0 0.0
    %218 = vmatprep.subr.mxu0 0.0
    %219 = vmatpush1.xpose.msra.mxu0 0.0
    %220 = vmatprep.subr.mxu0 0.0
    %221 = vmatpush1.xpose.msra.mxu0 0.0
    %222 = vmatprep.subr.mxu0 0.0
    %223 = vmatpush1.xpose.msra.mxu0 0.0
    %224 = vmatprep.subr.mxu0 0.0
    %225 = vmatpush1.xpose.msra.mxu0 0.0
    %226 = vmatprep.subr.mxu0 0.0
    %227 = vmatpush1.xpose.msra.mxu0 0.0
    %228 = vmatprep.subr.mxu0 0.0
    %229 = vmatpush1.xpose.msra.mxu0 0.0
    %230 = vmatprep.subr.mxu0 0.0
    %231 = vmatpush1.xpose.msra.mxu0 0.0
    %232 = vmatprep.subr.mxu0 0.0
    %233 = vmatpush1.xpose.msra.mxu0 0.0
    %234 = vmatprep.subr.mxu0 0.0
    %235 = vmatpush1.xpose.msra.mxu0 0.0
    %236 = vmatprep.subr.mxu0 0.0
    %237 = vmatpush1.xpose.msra.mxu0 0.0
    %238 = vmatprep.subr.mxu0 0.0
    %239 = vmatpush1.xpose.msra.mxu0 0.0
    %240 = vmatprep.subr.mxu0 0.0
    %241 = vmatpush1.xpose.msra.mxu0 0.0
    %242 = vmatprep.subr.mxu0 0.0
    %243 = vmatpush1.xpose.msra.mxu0 0.0
    %244 = vmatprep.subr.mxu0 0.0
    %245 = vmatpush1.xpose.msra.mxu0 0.0
    %246 = vmatprep.subr.mxu0 0.0
    %247 = vmatpush1.xpose.msra.mxu0 0.0
    %248 = vmatprep.subr.mxu0 0.0
    %249 = vmatpush1.xpose.msra.mxu0 0.0
    %250 = vmatprep.subr.mxu0 0.0
    %251 = vmatpush1.xpose.msra.mxu0 0.0
    %252 = vmatprep.subr.mxu0 0.0
    %253 = vmatpush1.xpose.msra.mxu0 0.0
    %254 = vmatprep.subr.mxu0 0.0
    %255 = vmatpush1.xpose.msra.mxu0 0.0
    %256 = vmatprep.subr.mxu0 0.0
    %257 = vmatpush1.xpose.msra.mxu0 0.0
    %258 = vmatprep.subr.mxu0 0.0
    %259 = vmatpush1.xpose.msra.mxu0 0.0
    %260 = vmatprep.subr.mxu0 0.0
    %261 = vmatpush1.xpose.msra.mxu0 0.0
    %262 = vmatprep.subr.mxu0 0.0
    %263 = vmatpush1.xpose.msra.mxu0 0.0
    %264 = vmatprep.mubr.f32.mxu0 0.0
    %265 = vmatmul.mubr.f32.gmra.mrb[0].mxu0 %v195
    %v266 = vpop.f32.mrb[0].mxu0
    %v267 = vadd.f32 %v192, %v266
    %v268 = vpop.f32.mrb[0].mxu0
    %269 = vdwg.mxu0
    %v270 = vsub.f32 0.0, %v267
    %v271 = vmul.f32 %v270, 1.442695
    %v272 = vpow.pop %v271
    %v273 = vadd.f32 %v272, 1.0
    %v274 = vrcp.pop %v273
    %v275 = vmul.f32 1.0, %v274
    %vm276 = vcmask 8192
    %277 = vst.msk [vmem:[#allocation3] sm:$0x1] %vm276, %v275
    // Predicated region
    $region30: #{_lambda_.1} parent=1 // pred_check
      _
    $region31: #{_lambda_.1} parent=1 // pred_check_branch
      %279 = sbr.rel (0) target = $region33
    $region32: #{_lambda_.1} parent=1 // pred_region
      %s281 = ssub.s32 16, 16
      %282 = vsyncadd [#allocation4], %s281
      %s284 = sshll.u32 [#allocation3], 4
      %s285 = int_to_ptr.vmem [resolvable:$true] %s284
      %287 = dma.vmem_to_hbm [thread:$0]  %s285, 16, %s7, [#allocation4]
    $region33: #{_lambda_.1} parent=1 // pred_fallthru
      _
    // Predicated region
    $region34: #{_lambda_.1} parent=1 // pred_check
      _
    $region35: #{_lambda_.1} parent=1 // pred_check_branch
      %289 = sbr.rel (0) target = $region37
    $region36: #{_lambda_.1} parent=1 // pred_region
      %290 = dma.done [#allocation4], 16
    $region37: #{_lambda_.1} parent=1 // pred_fallthru
      _
    %291 = vsyncpa [#allocation4], 1

</llo_original>
